<compile_context>
chip_gen: v6e
topology: v6e:2x2x1
jax: 0.10.0
libtpu: 0.0.40
codegen_flags: <defaults>
</compile_context>

<pallas_src>
import numpy as np
import jax
import jax.numpy as jnp
from jax import lax
from jax.experimental import pallas as pl
from jax.experimental.pallas import tpu as pltpu


# ---------------------------------------------------------------------------
# Bilinear (align_corners=False, PyTorch-style) interpolation matrix.
# ---------------------------------------------------------------------------
def bilinear_matrix(out_size: int, in_size: int) -> np.ndarray:
    """M of shape (out_size, in_size) s.t. upsampled = M @ x (per axis)."""
    if out_size == in_size:
        return np.eye(out_size, dtype=np.float32)
    m = np.zeros((out_size, in_size), dtype=np.float32)
    if in_size == 1:
        m[:, 0] = 1.0
        return m
    scale = in_size / out_size
    for i in range(out_size):
        src = max((i + 0.5) * scale - 0.5, 0.0)
        i0 = min(int(np.floor(src)), in_size - 1)
        i1 = min(i0 + 1, in_size - 1)
        frac = src - i0
        m[i, i0] += 1.0 - frac
        m[i, i1] += frac
    return m


# ---------------------------------------------------------------------------
# Tiling helpers (VMEM-footprint aware, dtype-packing aligned).
# ---------------------------------------------------------------------------
def _aligned_channel_divisors(C: int, itemsize: int):
    pack = {1: 32, 2: 16, 4: 8}.get(itemsize, 8)
    return sorted({c for c in range(1, C + 1)
                   if C % c == 0 and (c == C or c % pack == 0)}, reverse=True)


def _hw_divisors(HW: int):
    return sorted({h for h in range(1, HW + 1)
                   if HW % h == 0 and (h == HW or h % 128 == 0)}, reverse=True)


def _vmem_limit_bytes() -> int:
    try:
        cap = getattr(pltpu.get_tpu_info(), "vmem_capacity_bytes", None)
    except Exception:
        cap = None
    if not cap:
        cap = 64 << 20            # conservative (v7x) fallback
    return max(16 << 20, min(int(cap) * 3 // 4, 100 << 20))


def _pick_flat_tiles(C, HW, K, itemsize, u_itemsize, budget):
    """(Ct, HWt) for the flattened (kron / deepest) kernels.  Footprint counts the
    double-buffered in/out/deeper/operator blocks plus the f32 temporaries."""
    def footprint(ct, hwt):
        dbl = 2 * (2 * ct * hwt * itemsize       # shallower in + out blocks
                   + ct * K * itemsize           # flattened deeper block
                   + K * hwt * u_itemsize        # kron interpolation operator block
                   + ct * 4)                     # gate block (f32)
        temps = ct * hwt * 4                     # f32 upsample result
        return dbl + temps + (256 << 10)
    ct_cands = _aligned_channel_divisors(C, itemsize)
    hw_cands = _hw_divisors(HW)
    for hwt in hw_cands:                         # prefer the widest lane-dense block
        for ct in ct_cands:                      # then the biggest channel tile
            if footprint(ct, hwt) <= budget:
                return ct, hwt
    return ct_cands[-1], hw_cands[-1]


def _pick_ct_separable(C, H, W, Hd, Wd, itemsize, budget):
    def footprint(ct):
        dbl = 2 * (2 * ct * H * W * itemsize     # shallower in + out
                   + ct * Hd * Wd * itemsize     # deeper
                   + (H * Hd + Wd * W) * itemsize
                   + ct * 4)
        temps = ct * (Hd * W + H * W + H * Hd) * 4   # f32 t, up, small uh broadcast
        return dbl + temps + (256 << 10)
    cands = _aligned_channel_divisors(C, itemsize)
    for ct in cands:
        if footprint(ct) <= budget:
            return ct
    return cands[-1]


def _ensure_min_blocks(other_blocks, HW, HWt, min_blocks=2):
    """Split the lane dim further if the grid would leave a v7x TensorCore idle."""
    if other_blocks * (HW // HWt) >= min_blocks:
        return HWt
    smaller = [h for h in _hw_divisors(HWt) if h < HWt]
    return max(smaller) if smaller else HWt


# ---------------------------------------------------------------------------
# Kernels.
# ---------------------------------------------------------------------------
def _cab_deepest_kernel(gate_ref, sh_ref, dp_ref, out_ref):
    # gate: (1,Ct,1) f32 | sh: (1,Ct,HWt) | dp: (1,Ct,1) | out: (1,Ct,HWt)
    sh = sh_ref[0]
    g = gate_ref[0].astype(sh.dtype)                    # (Ct, 1)
    d = dp_ref[0].astype(sh.dtype)                      # (Ct, 1)
    out_ref[0] = (sh * g + d).astype(out_ref.dtype)     # pure VPU pass


def _cab_kron_kernel(gate_ref, sh_ref, dp_ref, ut_ref, out_ref):
    # gate: (1,Ct,1) f32 | sh: (1,Ct,HWt) | dp: (1,Ct,HdWd) | ut: (HdWd,HWt) | out: (1,Ct,HWt)
    sh = sh_ref[0]
    g = gate_ref[0].astype(sh.dtype)                    # (Ct, 1)
    # Single MXU matmul; result already in the lane-dense flattened layout.
    up = jnp.dot(dp_ref[0], ut_ref[...],
                 preferred_element_type=jnp.float32)    # (Ct, HWt) f32
    out_ref[0] = (sh * g + up.astype(sh.dtype)).astype(out_ref.dtype)


def _cab_separable_kernel(gate_ref, sh_ref, dp_ref, uh_ref, uwT_ref, out_ref):
    # gate: (1,Ct,1,1) f32 | sh/out: (1,Ct,H,W) | dp: (1,Ct,Hd,Wd) | uh: (H,Hd) | uwT: (Wd,W)
    sh = sh_ref[0]                                      # (Ct, H, W)
    dp = dp_ref[0]                                      # (Ct, Hd, Wd)
    Ct, Hd, Wd = dp.shape
    H = uh_ref.shape[0]
    W = uwT_ref.shape[1]
    g = gate_ref[0].astype(sh.dtype)                    # (Ct, 1, 1)
    # Width pass: fold the channel tile into the matmul M dimension (no batch dims,
    # no broadcast of the interpolation matrix).
    t = jnp.dot(dp.reshape(Ct * Hd, Wd), uwT_ref[...],
                preferred_element_type=jnp.float32).reshape(Ct, Hd, W)   # f32
    # Height pass: batched over channels; uh broadcast is tiny (Ct*H*Hd f32).
    uh_b = jnp.broadcast_to(uh_ref[...].astype(jnp.float32)[None], (Ct, H, Hd))
    up = lax.dot_general(uh_b, t, (((2,), (1,)), ((0,), (0,))),
                         preferred_element_type=jnp.float32)             # (Ct, H, W)
    out_ref[0] = (sh * g + up.astype(sh.dtype)).astype(out_ref.dtype)


# ---------------------------------------------------------------------------
# Wrapper.
# ---------------------------------------------------------------------------
def cab_forward(shallower, deeper, w1, b1, w2, b2, deepest=False, upsample_path="auto"):
    """shallower: (N, C, H, W); deeper: (N, C, Hd, Wd) ((N,C,1,1) if deepest).
    w1: (C, 2C), b1: (C,), w2: (C, C), b2: (C,).  upsample_path: auto|kron|separable."""
    N, C, H, W = shallower.shape
    Nd, Cd, Hd, Wd = deeper.shape
    assert (N, C) == (Nd, Cd)
    if deepest:
        assert Hd == 1 and Wd == 1, "deepest=True implies deeper is (N, C, 1, 1)"

    dtype = shallower.dtype
    itemsize = jnp.dtype(dtype).itemsize
    HW, HdWd = H * W, Hd * Wd

    # --- gate: global-avg-pool + conv1x1/relu/conv1x1 + sigmoid (hoisted to XLA). ---
    # dtype=f32 keeps the reduce in the native-dtype HBM stream (no full f32 copy).
    sp = jnp.mean(shallower, axis=(2, 3), dtype=jnp.float32)           # (N, C)
    dpool = jnp.mean(deeper, axis=(2, 3), dtype=jnp.float32)           # (N, C)
    gp = jnp.concatenate([sp, dpool], axis=1)                          # (N, 2C)
    hmid = jax.nn.relu(gp @ w1.astype(jnp.float32).T + b1.astype(jnp.float32))
    gate = jax.nn.sigmoid(hmid @ w2.astype(jnp.float32).T + b2.astype(jnp.float32))
    gate = gate[:, :, None]                                            # (N, C, 1) f32

    vmem_limit = _vmem_limit_bytes()
    budget = vmem_limit - (4 << 20)
    sh_flat = shallower.reshape(N, C, HW)

    # ----------------------- deepest / 1x1 deep feature map -----------------------
    if HdWd == 1:
        Ct, HWt = _pick_flat_tiles(C, HW, 1, itemsize, 0, budget)
        HWt = _ensure_min_blocks(N * (C // Ct), HW, HWt)
        dp_flat = deeper.reshape(N, C, 1)
        ce = pl.CostEstimate(
            flops=2 * N * C * HW, transcendentals=0,
            bytes_accessed=int((2 * N * C * HW + 2 * N * C) * itemsize + N * C * 4))
        out_flat = pl.pallas_call(
            _cab_deepest_kernel,
            out_shape=jax.ShapeDtypeStruct((N, C, HW), dtype),
            grid_spec=pltpu.PrefetchScalarGridSpec(
                num_scalar_prefetch=0,
                grid=(N, C // Ct, HW // HWt),
                in_specs=[
                    pl.BlockSpec((1, Ct, 1), lambda n, c, s: (n, c, 0)),      # gate
                    pl.BlockSpec((1, Ct, HWt), lambda n, c, s: (n, c, s)),    # shallower
                    pl.BlockSpec((1, Ct, 1), lambda n, c, s: (n, c, 0)),      # deeper
                ],
                out_specs=pl.BlockSpec((1, Ct, HWt), lambda n, c, s: (n, c, s)),
            ),
            compiler_params=pltpu.CompilerParams(
                dimension_semantics=("parallel", "parallel", "parallel"),
                vmem_limit_bytes=vmem_limit),
            cost_estimate=ce,
        )(gate, sh_flat, dp_flat)
        return out_flat.reshape(N, C, H, W)

    use_kron = upsample_path == "kron" or (
        upsample_path == "auto"
        and HdWd <= 256
        and HdWd * HW * itemsize <= (2 << 20))

    # ------------------------------ fused-kron path -------------------------------
    if use_kron:
        # up_flat = dp_flat @ kron(uh, uw)^T ; result is directly lane-dense (Ct, HW).
        UT = np.kron(bilinear_matrix(H, Hd), bilinear_matrix(W, Wd)).T   # (HdWd, HW)
        UT = jnp.asarray(UT).astype(dtype)
        dp_flat = deeper.reshape(N, C, HdWd)
        Ct, HWt = _pick_flat_tiles(C, HW, HdWd, itemsize, itemsize, budget)
        HWt = _ensure_min_blocks(N * (C // Ct), HW, HWt)
        ce = pl.CostEstimate(
            flops=2 * N * C * HW * HdWd + 2 * N * C * HW, transcendentals=0,
            bytes_accessed=int((2 * N * C * HW + N * C * HdWd) * itemsize
                               + N * (C // Ct) * HdWd * HW * itemsize
                               + N * C * 4))
        out_flat = pl.pallas_call(
            _cab_kron_kernel,
            out_shape=jax.ShapeDtypeStruct((N, C, HW), dtype),
            grid_spec=pltpu.PrefetchScalarGridSpec(
                num_scalar_prefetch=0,
                grid=(N, C // Ct, HW // HWt),
                in_specs=[
                    pl.BlockSpec((1, Ct, 1), lambda n, c, s: (n, c, 0)),      # gate
                    pl.BlockSpec((1, Ct, HWt), lambda n, c, s: (n, c, s)),    # shallower
                    pl.BlockSpec((1, Ct, HdWd), lambda n, c, s: (n, c, 0)),   # deeper (flat)
                    pl.BlockSpec((HdWd, HWt), lambda n, c, s: (0, s)),        # kron operator
                ],
                out_specs=pl.BlockSpec((1, Ct, HWt), lambda n, c, s: (n, c, s)),
            ),
            compiler_params=pltpu.CompilerParams(
                dimension_semantics=("parallel", "parallel", "parallel"),
                vmem_limit_bytes=vmem_limit),
            cost_estimate=ce,
        )(gate, sh_flat, dp_flat, UT)
        return out_flat.reshape(N, C, H, W)

    # --------------------------- separable fallback path --------------------------
    uh = jnp.asarray(bilinear_matrix(H, Hd)).astype(dtype)               # (H, Hd)
    uwT = jnp.asarray(bilinear_matrix(W, Wd).T).astype(dtype)            # (Wd, W)
    gate4 = gate.reshape(N, C, 1, 1)
    Ct = _pick_ct_separable(C, H, W, Hd, Wd, itemsize, budget)
    ce = pl.CostEstimate(
        flops=2 * N * C * (Hd * W * Wd + H * W * Hd) + 2 * N * C * HW,
        transcendentals=0,
        bytes_accessed=int((2 * N * C * HW + N * C * HdWd) * itemsize + N * C * 4))
    out = pl.pallas_call(
        _cab_separable_kernel,
        out_shape=jax.ShapeDtypeStruct((N, C, H, W), dtype),
        grid_spec=pltpu.PrefetchScalarGridSpec(
            num_scalar_prefetch=0,
            grid=(N, C // Ct),
            in_specs=[
                pl.BlockSpec((1, Ct, 1, 1), lambda n, c: (n, c, 0, 0)),       # gate
                pl.BlockSpec((1, Ct, H, W), lambda n, c: (n, c, 0, 0)),       # shallower
                pl.BlockSpec((1, Ct, Hd, Wd), lambda n, c: (n, c, 0, 0)),     # deeper
                pl.BlockSpec((H, Hd), lambda n, c: (0, 0)),                   # uh
                pl.BlockSpec((Wd, W), lambda n, c: (0, 0)),                   # uw^T
            ],
            out_specs=pl.BlockSpec((1, Ct, H, W), lambda n, c: (n, c, 0, 0)),
        ),
        compiler_params=pltpu.CompilerParams(
            dimension_semantics=("parallel", "parallel"),
            vmem_limit_bytes=vmem_limit),
        cost_estimate=ce,
    )(gate4, shallower, deeper, uh, uwT)
    return out


# ---------------------------------------------------------------------------
# Pure-JAX reference (same math, no Pallas).
# ---------------------------------------------------------------------------
def cab_reference(shallower, deeper, w1, b1, w2, b2):
    N, C, H, W = shallower.shape
    sp = jnp.mean(shallower, axis=(2, 3))
    dpool = jnp.mean(deeper, axis=(2, 3))
    g = jnp.concatenate([sp, dpool], axis=1)
    h = jax.nn.relu(g @ w1.T + b1)
    y = h @ w2.T + b2
    gate = jax.nn.sigmoid(y)[:, :, None, None]
    uh = jnp.asarray(bilinear_matrix(H, deeper.shape[2]))
    uw = jnp.asarray(bilinear_matrix(W, deeper.shape[3]))
    up = jnp.einsum('hH,ncHW,wW->nchw', uh, deeper, uw)
    return shallower * gate + up


if __name__ == "__main__":
    N, oc = 2, 4
    H = W = 16
    Hd = Wd = 8  # deeper feature map at half resolution (deepest=False)

    key = jax.random.PRNGKey(0)
    ks = jax.random.split(key, 7)

    shallower = jax.random.normal(ks[0], (N, oc, H, W), dtype=jnp.float32)
    deeper = jax.random.normal(ks[1], (N, oc, Hd, Wd), dtype=jnp.float32)
    deeper1 = jax.random.normal(ks[2], (N, oc, 1, 1), dtype=jnp.float32)

    # Deterministic synthetic parameters (1x1 conv weights == dense matrices).
    w1 = 0.1 * jax.random.normal(ks[3], (oc, 2 * oc), dtype=jnp.float32)  # conv(2*oc, oc, 1)
    b1 = 0.05 * jax.random.normal(ks[4], (oc,), dtype=jnp.float32)
    w2 = 0.1 * jax.random.normal(ks[5], (oc, oc), dtype=jnp.float32)      # conv(oc, oc, 1)
    b2 = 0.05 * jax.random.normal(ks[6], (oc,), dtype=jnp.float32)

    # 1) default path (fused-kron upsample).
    out = jax.block_until_ready(cab_forward(shallower, deeper, w1, b1, w2, b2, deepest=False))
    ref = jax.block_until_ready(cab_reference(shallower, deeper, w1, b1, w2, b2))
    assert out.shape == (N, oc, H, W)
    assert jnp.allclose(out, ref, atol=1e-4, rtol=1e-4), "kron path mismatch vs reference"

    # 2) separable fallback path (forced, same semantics).
    out_sep = jax.block_until_ready(
        cab_forward(shallower, deeper, w1, b1, w2, b2, deepest=False, upsample_path="separable"))
    assert jnp.allclose(out_sep, ref, atol=1e-4, rtol=1e-4), "separable path mismatch vs reference"

    # 3) deepest path (deeper is already (N, C, 1, 1) -> VPU-only kernel).
    out_d = jax.block_until_ready(cab_forward(shallower, deeper1, w1, b1, w2, b2, deepest=True))
    ref_d = jax.block_until_ready(cab_reference(shallower, deeper1, w1, b1, w2, b2))
    assert jnp.allclose(out_d, ref_d, atol=1e-4, rtol=1e-4), "deepest path mismatch vs reference"

    # TODO(synk): att_vec path not implemented — it is shape-inconsistent with conv(2*oc, oc, 1)
    # unless att_vec is empty, so only the att_vec=None branch is reproduced.
    print("KERNEL_OK")
</pallas_src>

<mosaic_0001>
module attributes {stable_mosaic.version = 11 : i64} {
  func.func @_cab_kron_kernel(%arg0: i32, %arg1: i32, %arg2: i32, %arg3: memref<1x4x1xf32, #tpu.memory_space<vmem>>, %arg4: memref<1x4x256xf32, #tpu.memory_space<vmem>>, %arg5: memref<1x4x64xf32, #tpu.memory_space<vmem>>, %arg6: memref<64x256xf32, #tpu.memory_space<vmem>>, %arg7: memref<1x4x256xf32, #tpu.memory_space<vmem>>) attributes {dimension_semantics = [#tpu.dimension_semantics<parallel>, #tpu.dimension_semantics<parallel>, #tpu.dimension_semantics<parallel>], iteration_bounds = array<i64: 2, 1, 1>, scalar_prefetch = 0 : i64, scratch_operands = 0 : i64, tpu.core_type = #tpu.core_type<tc>, window_params = [{transform_indices = @transform_0, window_bounds = array<i64: 1, 4, 1>}, {transform_indices = @transform_1, window_bounds = array<i64: 1, 4, 256>}, {transform_indices = @transform_2, window_bounds = array<i64: 1, 4, 64>}, {transform_indices = @transform_3, window_bounds = array<i64: 64, 256>}, {transform_indices = @transform_4, window_bounds = array<i64: 1, 4, 256>}]} {
    %c0 = arith.constant 0 : index
    %c0_0 = arith.constant 0 : index
    %c0_1 = arith.constant 0 : index
    %0 = vector.load %arg4[%c0, %c0_0, %c0_1] : memref<1x4x256xf32, #tpu.memory_space<vmem>>, vector<1x4x256xf32>
    %1 = vector.shape_cast %0 : vector<1x4x256xf32> to vector<4x256xf32>
    %c0_2 = arith.constant 0 : index
    %c0_3 = arith.constant 0 : index
    %c0_4 = arith.constant 0 : index
    %2 = vector.load %arg3[%c0_2, %c0_3, %c0_4] : memref<1x4x1xf32, #tpu.memory_space<vmem>>, vector<1x4x1xf32>
    %3 = vector.shape_cast %2 : vector<1x4x1xf32> to vector<4x1xf32>
    %c0_5 = arith.constant 0 : index
    %c0_6 = arith.constant 0 : index
    %c0_7 = arith.constant 0 : index
    %4 = vector.load %arg5[%c0_5, %c0_6, %c0_7] : memref<1x4x64xf32, #tpu.memory_space<vmem>>, vector<1x4x64xf32>
    %5 = vector.shape_cast %4 : vector<1x4x64xf32> to vector<4x64xf32>
    %c0_8 = arith.constant 0 : index
    %c0_9 = arith.constant 0 : index
    %6 = vector.load %arg6[%c0_8, %c0_9] : memref<64x256xf32, #tpu.memory_space<vmem>>, vector<64x256xf32>
    %cst = arith.constant dense<0.000000e+00> : vector<4x256xf32>
    %7 = tpu.matmul %5, %6, %cst {dimension_numbers = #tpu.dot_dimension_numbers<[1], [0], [0], [1], [0, 0, 1, 1], [], []>} : vector<4x64xf32>, vector<64x256xf32>, vector<4x256xf32> -> vector<4x256xf32>
    %8 = vector.broadcast %3 : vector<4x1xf32> to vector<4x256xf32>
    %9 = arith.mulf %1, %8 : vector<4x256xf32>
    %10 = arith.addf %9, %7 : vector<4x256xf32>
    %c0_10 = arith.constant 0 : index
    %c0_11 = arith.constant 0 : index
    %c0_12 = arith.constant 0 : index
    %11 = vector.load %arg7[%c0_10, %c0_11, %c0_12] : memref<1x4x256xf32, #tpu.memory_space<vmem>>, vector<1x4x256xf32>
    %12 = vector.shape_cast %11 : vector<1x4x256xf32> to vector<4x256xf32>
    %13 = vector.shape_cast %10 : vector<4x256xf32> to vector<1x4x256xf32>
    tpu.vector_store %arg7[%c0_10, %c0_11, %c0_12], %13 {strides = array<i32>} : memref<1x4x256xf32, #tpu.memory_space<vmem>>, vector<1x4x256xf32>,
    return
  }
  func.func @transform_0(%arg0: i32, %arg1: i32, %arg2: i32) -> (i32, i32, i32) {
    %c0_i32 = arith.constant 0 : i32
    %c0_i32_0 = arith.constant 0 : i32
    return %arg0, %arg1, %c0_i32 : i32, i32, i32
  }
  func.func @transform_1(%arg0: i32, %arg1: i32, %arg2: i32) -> (i32, i32, i32) {
    %c0_i32 = arith.constant 0 : i32
    return %arg0, %arg1, %arg2 : i32, i32, i32
  }
  func.func @transform_2(%arg0: i32, %arg1: i32, %arg2: i32) -> (i32, i32, i32) {
    %c0_i32 = arith.constant 0 : i32
    %c0_i32_0 = arith.constant 0 : i32
    return %arg0, %arg1, %c0_i32 : i32, i32, i32
  }
  func.func @transform_3(%arg0: i32, %arg1: i32, %arg2: i32) -> (i32, i32) {
    %c0_i32 = arith.constant 0 : i32
    %c0_i32_0 = arith.constant 0 : i32
    return %c0_i32, %arg2 : i32, i32
  }
  func.func @transform_4(%arg0: i32, %arg1: i32, %arg2: i32) -> (i32, i32, i32) {
    %c0_i32 = arith.constant 0 : i32
    return %arg0, %arg1, %arg2 : i32, i32, i32
  }
}

</mosaic_0001>

<llo_original>
// kernel: tpu_custom_call.1
$region0: #{tpu_custom_call.1}
  #allocation0 [shape = 'u32[]', space=smem, size = 0x4, offset = 0x4, fixed_abs, tag = 'smem constant byte address 0x4 - core index']
  #allocation1 [shape = 'u32[144,128]{1,0:T(1,128)}', space=vmem, size = 0x12000, scoped, tag = 'internal scratch']
  %s0 = inlined_call_operand.vmem [shape: f32[2,4,1], index: 0, kind: input, shape index: {}]
  %s1 = inlined_call_operand.hbm [shape: f32[2,4,256], index: 1, kind: input, shape index: {}]
  %s2 = inlined_call_operand.vmem [shape: f32[2,4,64], index: 2, kind: input, shape index: {}]
  %s3 = inlined_call_operand.hbm [shape: f32[64,256], index: 3, kind: input, shape index: {}]
  %s4 = inlined_call_operand.hbm [shape: f32[2,4,256], index: 4, kind: output, shape index: {}]
  %s5 = sld [smem:[#allocation0]]
  $region57: #{tpu_custom_call.1} parent=0
    _
  %s7 = ssub.s32 1, %s5
  %s8 = scalar_select 0, %s7, %s5
  $region1: #{tpu_custom_call.1} parent=0
    #allocation2 [shape = 'u8[8192]{0}', space=vmem, size = 0x2000, scoped, tag = 'input window, operand 1']
    #allocation3 [shape = 's32[2]{0}', space=sflag, size = 0x8, scoped, tag = 'scoped memory for tpu_custom_call.1']
    #allocation4 [shape = 's32[2]{0}', space=sflag, size = 0x8, scoped, tag = 'scoped memory for tpu_custom_call.1']
    #allocation5 [shape = 'u8[65536]{0}', space=vmem, size = 0x10000, scoped, tag = 'input window, operand 3, single buffered']
    #allocation6 [shape = 's32[1]{0}', space=sflag, size = 0x4, scoped, tag = 'scoped memory for tpu_custom_call.1']
    #allocation7 [shape = 'u8[8192]{0}', space=vmem, size = 0x2000, scoped, tag = 'output window, operand 0']
    %9 = vsyncpa [#allocation3], 0
    %s10 = scalar_lea.sflag [#allocation3], 1
    %11 = vsyncpa %s10, 0
    %12 = vsyncpa [#allocation6], 0
    %13 = vsyncpa [#allocation4], 0
    %s14 = scalar_lea.sflag [#allocation4], 1
    %15 = vsyncpa %s14, 0
    loop: start=0, step=1, limit=4
    $region2: #{tpu_custom_call.1} parent=1 // loop_pre_header
      _
    $region3: #{tpu_custom_call.1} parent=1 // loop_header
      %s17 = sphi 0, %s21
      %p18 = scmp.ge.s32.totalorder %s17, 4
      %s24 = sphi 0, %s43
      %s25 = sphi 0, %s39
      %s26 = sphi 0, %s35
      %s27 = sphi 0, %s24
      %s28 = sphi 0, %s25
      %s29 = sphi 0, %s26
      %s30 = sphi 0, %s27
      %s31 = sphi 0, %s28
      %s32 = sphi 0, %s29
      %s48 = sphi 0, %s50
      %s51 = sphi 0, %s48
      %s52 = sphi 0, %s51
      %s68 = sphi 0, %s52
      %s78 = sphi 0, %s80
      %s81 = sphi 0, %s78
      %s82 = sphi 0, %s81
      %s98 = sphi 0, %s82
      %s106 = sphi 0, %s108
      %s109 = sphi 0, %s106
      %s110 = sphi 0, %s109
      %s126 = sphi 0, %s110
      %s132 = sphi 0, %s134
      %s135 = sphi 0, %s132
      %s136 = sphi 0, %s135
      %s152 = sphi 0, %s136
      %s162 = sphi 0, %s164
      %s165 = sphi 0, %s162
      %s166 = sphi 0, %s165
      %s182 = sphi 0, %s166
    $region4: #{tpu_custom_call.1} parent=1 // loop_header_branch
      %20 = sbr.rel (%p18) target = $region8
    $region5: #{tpu_custom_call.1} parent=1 // loop_body
      %s22 = ssub.s32 %s17, 1
      %s23 = ssub.s32 %s17, 2
      %s33 = sadd.s32 1, %s26
      %p34 = scmp.ge.s32.totalorder %s33, 1
      %s35 = scalar_select %p34, 0, %s33
      %s36 = sadd.s32 1, %s25
      %s37 = scalar_select %p34, %s36, %s25
      %p38 = scmp.ge.s32.totalorder %s37, 1
      %s39 = scalar_select %p38, 0, %s37
      %s40 = sadd.s32 1, %s24
      %s41 = scalar_select %p38, %s40, %s24
      %p42 = scmp.ge.s32.totalorder %s41, 2
      %s43 = scalar_select %p42, 0, %s41
      %s44 = ssub.s32 %s24, %s43
      %s45 = ssub.s32 %s25, %s39
      %s46 = sor.u32 %s44, %s45
      %p47 = scmp.eq.s32.totalorder %s46, 0
      %s49 = sadd.s32 %s48, 1
      %s50 = scalar_select %p47, %s48, %s49
      %p53 = pneg %p47
      %p54 = scmp.eq.s32.totalorder %s17, 1
      %p55 = por %p53, %p54
      %p56 = scmp.ne.s32.totalorder %s48, %s51
      %p57 = scmp.eq.s32.totalorder %s17, 0
      %p58 = por %p56, %p57
      %p59 = scmp.ne.s32.totalorder %s48, %s51
      %p60 = scmp.eq.s32.totalorder %s22, 1
      %p61 = por %p59, %p60
      %p62 = scmp.ne.s32.totalorder %s51, %s52
      %p63 = scmp.eq.s32.totalorder %s22, 0
      %p64 = por %p62, %p63
      %p65 = scmp.ne.s32.totalorder %s51, %s52
      %p66 = scmp.eq.s32.totalorder %s23, 1
      %p67 = por %p65, %p66
      %p69 = scmp.ne.s32.totalorder %s52, %s68
      %p70 = scmp.eq.s32.totalorder %s23, 0
      %p71 = por %p69, %p70
      %s72 = ssub.s32 %s24, %s43
      %s73 = ssub.s32 %s25, %s39
      %s74 = sor.u32 %s72, %s73
      %s75 = ssub.s32 %s26, %s35
      %s76 = sor.u32 %s74, %s75
      %p77 = scmp.eq.s32.totalorder %s76, 0
      %s79 = sadd.s32 %s78, 1
      %s80 = scalar_select %p77, %s78, %s79
      %p83 = pneg %p77
      %p84 = scmp.eq.s32.totalorder %s17, 1
      %p85 = por %p83, %p84
      %p86 = scmp.ne.s32.totalorder %s78, %s81
      %p87 = scmp.eq.s32.totalorder %s17, 0
      %p88 = por %p86, %p87
      %p89 = scmp.ne.s32.totalorder %s78, %s81
      %p90 = scmp.eq.s32.totalorder %s22, 1
      %p91 = por %p89, %p90
      %p92 = scmp.ne.s32.totalorder %s81, %s82
      %p93 = scmp.eq.s32.totalorder %s22, 0
      %p94 = por %p92, %p93
      %p95 = scmp.ne.s32.totalorder %s81, %s82
      %p96 = scmp.eq.s32.totalorder %s23, 1
      %p97 = por %p95, %p96
      %p99 = scmp.ne.s32.totalorder %s82, %s98
      %p100 = scmp.eq.s32.totalorder %s23, 0
      %p101 = por %p99, %p100
      %s102 = ssub.s32 %s24, %s43
      %s103 = ssub.s32 %s25, %s39
      %s104 = sor.u32 %s102, %s103
      %p105 = scmp.eq.s32.totalorder %s104, 0
      %s107 = sadd.s32 %s106, 1
      %s108 = scalar_select %p105, %s106, %s107
      %p111 = pneg %p105
      %p112 = scmp.eq.s32.totalorder %s17, 1
      %p113 = por %p111, %p112
      %p114 = scmp.ne.s32.totalorder %s106, %s109
      %p115 = scmp.eq.s32.totalorder %s17, 0
      %p116 = por %p114, %p115
      %p117 = scmp.ne.s32.totalorder %s106, %s109
      %p118 = scmp.eq.s32.totalorder %s22, 1
      %p119 = por %p117, %p118
      %p120 = scmp.ne.s32.totalorder %s109, %s110
      %p121 = scmp.eq.s32.totalorder %s22, 0
      %p122 = por %p120, %p121
      %p123 = scmp.ne.s32.totalorder %s109, %s110
      %p124 = scmp.eq.s32.totalorder %s23, 1
      %p125 = por %p123, %p124
      %p127 = scmp.ne.s32.totalorder %s110, %s126
      %p128 = scmp.eq.s32.totalorder %s23, 0
      %p129 = por %p127, %p128
      %s130 = ssub.s32 %s26, %s35
      %p131 = scmp.eq.s32.totalorder %s130, 0
      %s133 = sadd.s32 %s132, 1
      %s134 = scalar_select %p131, %s132, %s133
      %p137 = pneg %p131
      %p138 = scmp.eq.s32.totalorder %s17, 1
      %p139 = por %p137, %p138
      %p140 = scmp.ne.s32.totalorder %s132, %s135
      %p141 = scmp.eq.s32.totalorder %s17, 0
      %p142 = por %p140, %p141
      %p143 = scmp.ne.s32.totalorder %s132, %s135
      %p144 = scmp.eq.s32.totalorder %s22, 1
      %p145 = por %p143, %p144
      %p146 = scmp.ne.s32.totalorder %s135, %s136
      %p147 = scmp.eq.s32.totalorder %s22, 0
      %p148 = por %p146, %p147
      %p149 = scmp.ne.s32.totalorder %s135, %s136
      %p150 = scmp.eq.s32.totalorder %s23, 1
      %p151 = por %p149, %p150
      %p153 = scmp.ne.s32.totalorder %s136, %s152
      %p154 = scmp.eq.s32.totalorder %s23, 0
      %p155 = por %p153, %p154
      %s156 = ssub.s32 %s24, %s43
      %s157 = ssub.s32 %s25, %s39
      %s158 = sor.u32 %s156, %s157
      %s159 = ssub.s32 %s26, %s35
      %s160 = sor.u32 %s158, %s159
      %p161 = scmp.eq.s32.totalorder %s160, 0
      %s163 = sadd.s32 %s162, 1
      %s164 = scalar_select %p161, %s162, %s163
      %p167 = pneg %p161
      %p168 = scmp.eq.s32.totalorder %s17, 1
      %p169 = por %p167, %p168
      %p170 = scmp.ne.s32.totalorder %s162, %s165
      %p171 = scmp.eq.s32.totalorder %s17, 0
      %p172 = por %p170, %p171
      %p173 = scmp.ne.s32.totalorder %s162, %s165
      %p174 = scmp.eq.s32.totalorder %s22, 1
      %p175 = por %p173, %p174
      %p176 = scmp.ne.s32.totalorder %s165, %s166
      %p177 = scmp.eq.s32.totalorder %s22, 0
      %p178 = por %p176, %p177
      %p179 = scmp.ne.s32.totalorder %s165, %s166
      %p180 = scmp.eq.s32.totalorder %s23, 1
      %p181 = por %p179, %p180
      %p183 = scmp.ne.s32.totalorder %s166, %s182
      %p184 = scmp.eq.s32.totalorder %s23, 0
      %p185 = por %p183, %p184
      %p186 = scmp.le.s32.totalorder 1, %s17
      %p187 = scmp.lt.s32.totalorder %s17, 3
      %p188 = pnand %p186, %p187
      %p189 = pneg %p188
      // Predicated region
      $region9: #{tpu_custom_call.1} parent=5 // pred_check
        _
      $region10: #{tpu_custom_call.1} parent=5 // pred_check_branch
        %191 = sbr.rel (%p188) target = $region12
      $region11: #{tpu_custom_call.1} parent=5 // pred_region
        %s192 = ssub.s32 %s17, 1
        // Predicated region
        $region13: #{tpu_custom_call.1} parent=11 // pred_check
          %p193 = pneg %p148
        $region14: #{tpu_custom_call.1} parent=11 // pred_check_branch
          %195 = sbr.rel (%p193) target = $region16
        $region15: #{tpu_custom_call.1} parent=11 // pred_region
          %s196 = smul.u32 2, %s29
          %s198 = ssub.s32 2048, 2048
          %199 = vsyncadd [#allocation6], %s198
          %s200 = smul.addr %s196, 128
          %s201 = scalar_lea.hbm %s3, %s200
          %s202 = sshll.u32 [#allocation5], 4
          %s203 = int_to_ptr.vmem [resolvable:$true] %s202
          %208 = dma.hbm_to_vmem [thread:$0]  %s201, 2048, %s203, [#allocation6], 256, 256, 16
        $region16: #{tpu_custom_call.1} parent=11 // pred_fallthru
          _
      $region12: #{tpu_custom_call.1} parent=5 // pred_fallthru
        _
      %p209 = scmp.lt.s32.totalorder %s17, 2
      // Predicated region
      $region17: #{tpu_custom_call.1} parent=5 // pred_check
        %p210 = pneg %p209
      $region18: #{tpu_custom_call.1} parent=5 // pred_check_branch
        %212 = sbr.rel (%p210) target = $region20
      $region19: #{tpu_custom_call.1} parent=5 // pred_region
        // Predicated region
        $region21: #{tpu_custom_call.1} parent=19 // pred_check
          %p213 = pneg %p58
        $region22: #{tpu_custom_call.1} parent=19 // pred_check_branch
          %215 = sbr.rel (%p213) target = $region24
        $region23: #{tpu_custom_call.1} parent=19 // pred_region
          %p216 = scmp.lt.s32.totalorder %s24, 1
          %s217 = scalar_select %p216, %s24, 1
          %p218 = scmp.lt.s32.totalorder %s25, 0
          %s219 = scalar_select %p218, %s25, 0
          %s220 = sadd.s32 %s219, %s217
          %s221 = smul.addr %s220, 4
          %s222 = scalar_lea.vmem %s0, %s221
        $region24: #{tpu_custom_call.1} parent=19 // pred_fallthru
          _
        // Predicated region
        $region25: #{tpu_custom_call.1} parent=19 // pred_check
          %p223 = pneg %p88
        $region26: #{tpu_custom_call.1} parent=19 // pred_check_branch
          %225 = sbr.rel (%p223) target = $region28
        $region27: #{tpu_custom_call.1} parent=19 // pred_region
          %s226 = sand.u32 %s78, 1
          %s227 = scalar_lea.sflag [#allocation3], %s226
          %s228 = sand.u32 %s78, 1
          %s229 = smul.addr %s228, 8
          %s230 = scalar_lea.vmem [#allocation2], %s229
          %s231 = smul.u32 2, %s26
          %s233 = ssub.s32 128, 128
          %234 = vsyncadd %s227, %s233
          %s235 = smul.addr %s25, 2
          %s236 = sadd.s32 %s231, %s235
          %s237 = smul.addr %s24, 2
          %s238 = sadd.s32 %s236, %s237
          %s239 = smul.addr %s238, 64
          %s240 = scalar_lea.hbm %s1, %s239
          %s242 = sshll.u32 %s230, 4
          %s243 = int_to_ptr.vmem [resolvable:$true] %s242
          %245 = dma.hbm_to_vmem [thread:$0]  %s240, 128, %s243, %s227
        $region28: #{tpu_custom_call.1} parent=19 // pred_fallthru
          _
        // Predicated region
        $region29: #{tpu_custom_call.1} parent=19 // pred_check
          %p246 = pneg %p116
        $region30: #{tpu_custom_call.1} parent=19 // pred_check_branch
          %248 = sbr.rel (%p246) target = $region32
        $region31: #{tpu_custom_call.1} parent=19 // pred_region
          %p249 = scmp.lt.s32.totalorder %s24, 1
          %s250 = scalar_select %p249, %s24, 1
          %p251 = scmp.lt.s32.totalorder %s25, 0
          %s252 = scalar_select %p251, %s25, 0
          %s253 = sadd.s32 %s252, %s250
          %s254 = smul.addr %s253, 4
          %s255 = scalar_lea.vmem %s2, %s254
        $region32: #{tpu_custom_call.1} parent=19 // pred_fallthru
          _
      $region20: #{tpu_custom_call.1} parent=5 // pred_fallthru
        _
      %p256 = scmp.le.s32.totalorder 1, %s17
      %p257 = scmp.lt.s32.totalorder %s17, 3
      %p258 = pnand %p256, %p257
      %p259 = pneg %p258
      // Predicated region
      $region33: #{tpu_custom_call.1} parent=5 // pred_check
        _
      $region34: #{tpu_custom_call.1} parent=5 // pred_check_branch
        %261 = sbr.rel (%p258) target = $region36
      $region35: #{tpu_custom_call.1} parent=5 // pred_region
        %s262 = ssub.s32 %s17, 1
        %s263 = sand.u32 %s81, 1
        %s264 = scalar_lea.sflag [#allocation3], %s263
        %s265 = sand.u32 %s81, 1
        %s266 = smul.addr %s265, 8
        %s267 = scalar_lea.vmem [#allocation2], %s266
        // Predicated region
        $region37: #{tpu_custom_call.1} parent=35 // pred_check
          %p268 = pneg %p94
        $region38: #{tpu_custom_call.1} parent=35 // pred_check_branch
          %270 = sbr.rel (%p268) target = $region40
        $region39: #{tpu_custom_call.1} parent=35 // pred_region
          %271 = dma.done %s264, 128
        $region40: #{tpu_custom_call.1} parent=35 // pred_fallthru
          _
        // Predicated region
        $region41: #{tpu_custom_call.1} parent=35 // pred_check
          %p272 = pneg %p148
        $region42: #{tpu_custom_call.1} parent=35 // pred_check_branch
          %274 = sbr.rel (%p272) target = $region44
        $region43: #{tpu_custom_call.1} parent=35 // pred_region
          %275 = dma.done [#allocation6], 2048
        $region44: #{tpu_custom_call.1} parent=35 // pred_fallthru
          _
        %p276 = scmp.lt.s32.totalorder %s27, 1
        %s277 = scalar_select %p276, %s27, 1
        %p278 = scmp.lt.s32.totalorder %s28, 0
        %s279 = scalar_select %p278, %s28, 0
        %s280 = sadd.s32 %s279, %s277
        %s281 = smul.addr %s280, 4
        %s282 = scalar_lea.vmem %s0, %s281
        %p283 = pneg %p64
        %p284 = pneg %p61
        %s285 = sand.u32 %s81, 1
        %s286 = scalar_lea.sflag [#allocation3], %s285
        %s287 = sand.u32 %s81, 1
        %s288 = smul.addr %s287, 8
        %s289 = scalar_lea.vmem [#allocation2], %s288
        %p290 = pneg %p94
        %p291 = pneg %p91
        %p292 = scmp.lt.s32.totalorder %s27, 1
        %s293 = scalar_select %p292, %s27, 1
        %p294 = scmp.lt.s32.totalorder %s28, 0
        %s295 = scalar_select %p294, %s28, 0
        %s296 = sadd.s32 %s295, %s293
        %s297 = smul.addr %s296, 4
        %s298 = scalar_lea.vmem %s2, %s297
        %p299 = pneg %p122
        %p300 = pneg %p119
        %p301 = pneg %p148
        %p302 = pneg %p145
        %p303 = pneg %p178
        %p304 = pneg %p175
        %s305 = sand.u32 %s165, 1
        %s306 = scalar_lea.sflag [#allocation4], %s305
        %s307 = sand.u32 %s165, 1
        %s308 = smul.addr %s307, 8
        %s309 = scalar_lea.vmem [#allocation7], %s308
        %p310 = scmp.lt.s32.totalorder %s27, 1
        %s311 = scalar_select %p310, %s27, 1
        %p312 = scmp.lt.s32.totalorder %s28, 0
        %s313 = scalar_select %p312, %s28, 0
        %s314 = sadd.s32 %s313, %s311
        %s315 = smul.addr %s314, 4
        %s316 = scalar_lea.vmem %s0, %s315
        %s317 = smul.u32 2, %s29
        %p318 = scmp.lt.s32.totalorder %s27, 1
        %s319 = scalar_select %p318, %s27, 1
        %p320 = scmp.lt.s32.totalorder %s28, 0
        %s321 = scalar_select %p320, %s28, 0
        %s322 = sadd.s32 %s321, %s319
        %s323 = smul.addr %s322, 4
        %s324 = scalar_lea.vmem %s2, %s323
        %s325 = smul.u32 2, %s29
        %s326 = smul.u32 2, %s29
        %v327 = vld [vmem:[%s267] sm:$0xff]
        %v328 = vld [vmem:[%s316] sm:$0xf]
        %v329 = vld [vmem:[%s324] sm:$0xf]
        %v330 = vld [vmem:[#allocation5] sm:$0xff]
        %v331 = vld [vmem:[#allocation5 + $0x8] sm:$0xff]
        %v332 = vld [vmem:[#allocation5 + $0x10] sm:$0xff]
        %v333 = vld [vmem:[#allocation5 + $0x18] sm:$0xff]
        %v334 = vld [vmem:[#allocation5 + $0x20] sm:$0xff]
        %v335 = vld [vmem:[#allocation5 + $0x28] sm:$0xff]
        %v336 = vld [vmem:[#allocation5 + $0x30] sm:$0xff]
        %v337 = vld [vmem:[#allocation5 + $0x38] sm:$0xff]
        %v338 = vld [vmem:[#allocation5 + $0x40] sm:$0xff]
        %v339 = vld [vmem:[#allocation5 + $0x48] sm:$0xff]
        %v340 = vld [vmem:[#allocation5 + $0x50] sm:$0xff]
        %v341 = vld [vmem:[#allocation5 + $0x58] sm:$0xff]
        %v342 = vld [vmem:[#allocation5 + $0x60] sm:$0xff]
        %v343 = vld [vmem:[#allocation5 + $0x68] sm:$0xff]
        %v344 = vld [vmem:[#allocation5 + $0x70] sm:$0xff]
        %v345 = vld [vmem:[#allocation5 + $0x78] sm:$0xff]
        %vm346 = vcmask 523264
        %v348 = vsel %vm346, %v329, 0
        %350 = vmatprep.subr.mxu0 0.0
        %351 = vmatpush1.msra.mxu0 0.0
        %352 = vmatprep.subr.mxu0 0.0
        %353 = vmatpush1.msra.mxu0 0.0
        %354 = vmatprep.subr.mxu0 0.0
        %355 = vmatpush1.msra.mxu0 0.0
        %356 = vmatprep.subr.mxu0 0.0
        %357 = vmatpush1.msra.mxu0 0.0
        %358 = vmatprep.subr.mxu0 0.0
        %359 = vmatpush1.msra.mxu0 0.0
        %360 = vmatprep.subr.mxu0 0.0
        %361 = vmatpush1.msra.mxu0 0.0
        %362 = vmatprep.subr.mxu0 0.0
        %363 = vmatpush1.msra.mxu0 0.0
        %364 = vmatprep.subr.mxu0 0.0
        %365 = vmatpush1.msra.mxu0 0.0
        %366 = vmatprep.subr.mxu0 %v345
        %367 = vmatpush1.msra.mxu0 %v344
        %368 = vmatprep.subr.mxu0 %v343
        %369 = vmatpush1.msra.mxu0 %v342
        %370 = vmatprep.subr.mxu0 %v341
        %371 = vmatpush1.msra.mxu0 %v340
        %372 = vmatprep.subr.mxu0 %v339
        %373 = vmatpush1.msra.mxu0 %v338
        %374 = vmatprep.subr.mxu0 %v337
        %375 = vmatpush1.msra.mxu0 %v336
        %376 = vmatprep.subr.mxu0 %v335
        %377 = vmatpush1.msra.mxu0 %v334
        %378 = vmatprep.subr.mxu0 %v333
        %379 = vmatpush1.msra.mxu0 %v332
        %380 = vmatprep.subr.mxu0 %v331
        %381 = vmatpush1.msra.mxu0 %v330
        %382 = vmatprep.subr.mxu0 0.0
        %383 = vmatpush2.msra.mxu0 0.0
        %384 = vmatprep.subr.mxu0 0.0
        %385 = vmatpush2.msra.mxu0 0.0
        %386 = vmatprep.subr.mxu0 0.0
        %387 = vmatpush2.msra.mxu0 0.0
        %388 = vmatprep.subr.mxu0 0.0
        %389 = vmatpush2.msra.mxu0 0.0
        %390 = vmatprep.subr.mxu0 0.0
        %391 = vmatpush2.msra.mxu0 0.0
        %392 = vmatprep.subr.mxu0 0.0
        %393 = vmatpush2.msra.mxu0 0.0
        %394 = vmatprep.subr.mxu0 0.0
        %395 = vmatpush2.msra.mxu0 0.0
        %396 = vmatprep.subr.mxu0 0.0
        %397 = vmatpush2.msra.mxu0 0.0
        %398 = vmatprep.subr.mxu0 0.0
        %399 = vmatpush2.msra.mxu0 0.0
        %400 = vmatprep.subr.mxu0 0.0
        %401 = vmatpush2.msra.mxu0 0.0
        %402 = vmatprep.subr.mxu0 0.0
        %403 = vmatpush2.msra.mxu0 0.0
        %404 = vmatprep.subr.mxu0 0.0
        %405 = vmatpush2.msra.mxu0 0.0
        %406 = vmatprep.subr.mxu0 0.0
        %407 = vmatpush2.msra.mxu0 0.0
        %408 = vmatprep.subr.mxu0 0.0
        %409 = vmatpush2.msra.mxu0 0.0
        %410 = vmatprep.subr.mxu0 0.0
        %411 = vmatpush2.msra.mxu0 0.0
        %412 = vmatprep.subr.mxu0 0.0
        %413 = vmatpush2.msra.mxu0 0.0
        %414 = vmatprep.mubr.f32.mxu0 0.0
        %415 = vmatmul.mubr.f32.gmra.mxu0 %v348
        %v416 = vpop.f32.mrf.mxu0
        %v417 = vadd.f32 0.0, %v416
        %v418 = vpop.f32.mrf.mxu0
        %v419 = vadd.f32 0.0, %v418
        %420 = vdwg.mxu0
        %422 = vset.pattern.permute.xlu0 0
        %423 = vperm.xlu0 %422, %v328
        %v424 = vpop.permute.xlu0 %423
        %v426 = vunpack.c.l.s4 839922192
        %v427 = vunpack.c.0.s8 %v426
        %v428 = vlaneseq
        %v429 = vshrl.u32 %v428, 7
        %v430 = vsub.s32 %v427, %v429
        %v431 = vrot.slane %v424, %v430
        %v433 = vmul.f32 %v327, %v431
        %v436 = vcombine.low %v417, %v419
        %v438 = vadd.f32 %v433, %v436
        %439 = vst [vmem:[%s309] sm:$0xff] %v438
        %s440 = sand.u32 %s165, 1
        %s441 = scalar_lea.sflag [#allocation4], %s440
        %s442 = sand.u32 %s165, 1
        %s443 = smul.addr %s442, 8
        %s444 = scalar_lea.vmem [#allocation7], %s443
        // Predicated region
        $region45: #{tpu_custom_call.1} parent=35 // pred_check
          %p445 = pneg %p175
        $region46: #{tpu_custom_call.1} parent=35 // pred_check_branch
          %447 = sbr.rel (%p445) target = $region48
        $region47: #{tpu_custom_call.1} parent=35 // pred_region
          %s448 = smul.u32 2, %s29
          %s450 = ssub.s32 128, 128
          %451 = vsyncadd %s441, %s450
          %s452 = smul.addr %s28, 2
          %s453 = sadd.s32 %s448, %s452
          %s454 = smul.addr %s27, 2
          %s455 = sadd.s32 %s453, %s454
          %s456 = smul.addr %s455, 64
          %s457 = scalar_lea.hbm %s4, %s456
          %s459 = sshll.u32 %s444, 4
          %s460 = int_to_ptr.vmem [resolvable:$true] %s459
          %462 = dma.vmem_to_hbm [thread:$0]  %s460, 128, %s457, %s441
        $region48: #{tpu_custom_call.1} parent=35 // pred_fallthru
          _
      $region36: #{tpu_custom_call.1} parent=5 // pred_fallthru
        _
      %p463 = scmp.le.s32.totalorder 2, %s17
      // Predicated region
      $region49: #{tpu_custom_call.1} parent=5 // pred_check
        %p464 = pneg %p463
      $region50: #{tpu_custom_call.1} parent=5 // pred_check_branch
        %466 = sbr.rel (%p464) target = $region52
      $region51: #{tpu_custom_call.1} parent=5 // pred_region
        %s467 = ssub.s32 %s17, 2
        // Predicated region
        $region53: #{tpu_custom_call.1} parent=51 // pred_check
          %p468 = pneg %p181
        $region54: #{tpu_custom_call.1} parent=51 // pred_check_branch
          %470 = sbr.rel (%p468) target = $region56
        $region55: #{tpu_custom_call.1} parent=51 // pred_region
          %s471 = sand.u32 %s166, 1
          %s472 = scalar_lea.sflag [#allocation4], %s471
          %s473 = sand.u32 %s166, 1
          %s474 = smul.addr %s473, 8
          %s475 = scalar_lea.vmem [#allocation7], %s474
          %476 = dma.done %s472, 128
        $region56: #{tpu_custom_call.1} parent=51 // pred_fallthru
          _
      $region52: #{tpu_custom_call.1} parent=5 // pred_fallthru
        _
    $region6: #{tpu_custom_call.1} parent=1 // loop_footer
      %s21 = sadd.s32 1, %s17
    $region7: #{tpu_custom_call.1} parent=1 // loop_footer_branch
      %16 = sbr.rel target = $region3
    $region8: #{tpu_custom_call.1} parent=1 // loop_exit
      _
    %477 = vsyncpa [#allocation3], 1
    %s478 = scalar_lea.sflag [#allocation3], 1
    %479 = vsyncpa %s478, 1
    %480 = vsyncpa [#allocation6], 1
    %481 = vsyncpa [#allocation4], 1
    %s482 = scalar_lea.sflag [#allocation4], 1
    %483 = vsyncpa %s482, 1

</llo_original>
